<compile_context>
chip_gen: v7x
topology: tpu7x:2x2x1
jax: 0.10.0
libtpu: 0.0.40
codegen_flags: <defaults>
</compile_context>

<pallas_src>
import functools

import jax
import jax.numpy as jnp
from jax.experimental import pallas as pl
from jax.experimental.pallas import tpu as pltpu


# ----------------------------- model dimensions -----------------------------
N_FEAT = 4            # per-particle input feature channels
N_VEC = 4             # lorentz-vector channels (px, py, pz, E)
N_PART = 16           # particles per event
HIDDEN = 32           # Phi / F hidden width
NUM_CLASSES = 5       # output logits
C_IN = N_FEAT + N_VEC

FLAT_X = C_IN * N_PART            # 128  lane-dense input row per event (c*P + p)
PH = N_PART * HIDDEN              # 512  per-event "particle x hidden" lane axis
OUT_PAD = 128                     # lane-dense logit / hidden row (unmasked stores)
MAX_TB = 1024                     # events per grid step (VMEM-safe on all gens)


def _phi_block() -> int:
    """Diagonal super-block size for kron(I_P, w2): match the MXU tile."""
    try:
        kind = jax.devices()[0].device_kind.lower()
    except Exception:  # pragma: no cover - e.g. backend not initialized
        kind = ""
    return 128 if ("v5" in kind or "v4" in kind) else 256


def _round_up(x: int, m: int) -> int:
    return ((x + m - 1) // m) * m


# --------------------------------- kernel -----------------------------------
def pmnn_kernel(x_ref, mask_ref, w1_ref, emask_ref, w2_ref, w3_ref, w4_ref,
                b12_ref, b34_ref, o_ref, *, blk):
    """One grid step == one tile of TB events.

    x_ref     : (TB, 128)   bf16  [features ++ lorentz], native NCL flatten (c*P + p)
    mask_ref  : (TB, 16)    bf16  particle validity mask
    w1_ref    : (128, 512)  bf16  block-diagonal dilation of w1
    emask_ref : (16, 512)   bf16  kron(I_P, ones(1,H)) mask-expansion
    w2_ref    : (blk, blk)  bf16  one diagonal super-block of kron(I_P, w2)
    w3_ref    : (blk, 128)  bf16  tile(w3, (blk/H, 1)), lane-padded (pooling folded)
    w4_ref    : (128, 128)  bf16  w4 lane/row padded
    b12_ref   : (2, 512)    f32   row0 = b1 tiled, row1 = b2 tiled
    b34_ref   : (2, 128)    f32   row0 = b3 padded, row1 = b4 padded
    o_ref     : (TB, 128)   bf16  lane-padded logits (first NUM_CLASSES lanes valid)
    """
    n_blk = PH // blk

    x = x_ref[...]                                    # (TB, 128) bf16
    mask = mask_ref[...]                              # (TB, 16)  bf16 (0/1 exact)

    b12 = b12_ref[...]
    b34 = b34_ref[...]
    b1 = b12[0:1, :]                                  # (1, 512) f32
    b2 = b12[1:2, 0:blk]                              # H-periodic -> any aligned chunk
    b3 = b34[0:1, :]                                  # (1, 128) f32
    b4 = b34[1:2, :]                                  # (1, 128) f32

    # --- Phi layer 1: per-particle dense as one lane-dense bf16 matmul ------
    h1 = jnp.dot(x, w1_ref[...], preferred_element_type=jnp.float32) + b1
    h1 = jnp.maximum(h1, 0.0)                         # (TB, 512) f32, lane = p*H + h

    # --- particle validity expanded to hidden lanes (exact mask semantics) --
    mexp = jnp.dot(mask, emask_ref[...],
                   preferred_element_type=jnp.float32)  # (TB, 512) f32

    # --- Phi layer 2 + mask + sum-pool, per diagonal super-block ------------
    # kron(I_P, w2)'s super-blocks are identical, so one (blk, blk) slab is
    # reused for every lane-aligned chunk; the pooling-folded w3 matmul is
    # accumulated per chunk.
    w2b = w2_ref[...]                                 # (blk, blk) bf16
    w3b = w3_ref[...]                                 # (blk, 128) bf16
    g = jnp.zeros((h1.shape[0], OUT_PAD), jnp.float32)
    for i in range(n_blk):                            # static unroll (2 or 4)
        lo = i * blk
        h2 = jnp.dot(h1[:, lo:lo + blk].astype(jnp.bfloat16), w2b,
                     preferred_element_type=jnp.float32) + b2
        h2 = jnp.maximum(h2, 0.0) * mexp[:, lo:lo + blk]
        g = g + jnp.dot(h2.astype(jnp.bfloat16), w3b,
                        preferred_element_type=jnp.float32)

    # --- F MLP -> lane-padded logits -----------------------------------------
    g = jnp.maximum(g + b3, 0.0)                      # (TB, 128) f32
    out = jnp.dot(g.astype(jnp.bfloat16), w4_ref[...],
                  preferred_element_type=jnp.float32) + b4
    o_ref[...] = out.astype(o_ref.dtype)              # (TB, 128) bf16, dense stores


# --------------------------------- wrapper ----------------------------------
def init_params(key):
    """Deterministic parameter init (natural shapes implied by PMNN.__init__)."""
    ks = jax.random.split(key, 4)
    scale = 0.1
    return {
        "w1": scale * jax.random.normal(ks[0], (C_IN, HIDDEN), jnp.float32),
        "b1": jnp.zeros((1, HIDDEN), jnp.float32),
        "w2": scale * jax.random.normal(ks[1], (HIDDEN, HIDDEN), jnp.float32),
        "b2": jnp.zeros((1, HIDDEN), jnp.float32),
        "w3": scale * jax.random.normal(ks[2], (HIDDEN, HIDDEN), jnp.float32),
        "b3": jnp.zeros((1, HIDDEN), jnp.float32),
        "w4": scale * jax.random.normal(ks[3], (HIDDEN, NUM_CLASSES), jnp.float32),
        "b4": jnp.zeros((1, NUM_CLASSES), jnp.float32),
    }


def _pack_params(p, blk):
    """Build MXU/lane-friendly bf16 weight slabs + small f32 bias slabs."""
    bp = blk // HIDDEN                                 # particles per super-block
    eye_p = jnp.eye(N_PART, dtype=jnp.float32)

    # big[c*P + q, p*H + h] = w1[c, h] * (q == p)
    w1_big = jnp.einsum("ch,qp->cqph", p["w1"], eye_p).reshape(FLAT_X, PH)

    emask = jnp.kron(eye_p, jnp.ones((1, HIDDEN), jnp.float32))        # (16, 512)

    w2_blk = jnp.kron(jnp.eye(bp, dtype=jnp.float32), p["w2"])         # (blk, blk)

    w3_blk = jnp.zeros((blk, OUT_PAD), jnp.float32).at[:, :HIDDEN].set(
        jnp.tile(p["w3"], (bp, 1)))                                    # (blk, 128)

    w4_pad = jnp.zeros((OUT_PAD, OUT_PAD), jnp.float32).at[
        :HIDDEN, :NUM_CLASSES].set(p["w4"])                            # (128, 128)

    b12 = jnp.concatenate([jnp.tile(p["b1"], (1, N_PART)),
                           jnp.tile(p["b2"], (1, N_PART))], axis=0)    # (2, 512) f32
    b34 = jnp.concatenate([
        jnp.zeros((1, OUT_PAD), jnp.float32).at[:, :HIDDEN].set(p["b3"]),
        jnp.zeros((1, OUT_PAD), jnp.float32).at[:, :NUM_CLASSES].set(p["b4"]),
    ], axis=0)                                                         # (2, 128) f32

    bf = lambda a: a.astype(jnp.bfloat16)
    return bf(w1_big), bf(emask), bf(w2_blk), bf(w3_blk), bf(w4_pad), b12, b34


@functools.partial(jax.jit, static_argnames=("embed_parts", "phi_block"))
def _pmnn_forward(points, features, lorentz_vectors, mask, params,
                  embed_parts, phi_block):
    del points           # unused by PMNNWrapper.forward
    del embed_parts      # TODO(synk): embed_parts=True (per-particle embeddings) not implemented
    B = features.shape[0]

    # Lane-dense bf16 inputs: pure channel concat + free reshape (no transpose).
    x = jnp.concatenate([features, lorentz_vectors], axis=1)           # (B, 8, 16)
    x = x.reshape(B, FLAT_X).astype(jnp.bfloat16)
    m = mask.reshape(B, N_PART).astype(jnp.bfloat16)

    w1_b, emask_b, w2_b, w3_b, w4_b, b12, b34 = _pack_params(params, phi_block)

    # Tile selection: rows are multiples of 8, and grid >= 2 whenever B > 8 so
    # the "parallel" batch axis shards across both v7x TensorCores.
    if B <= 8:
        tb = B
    else:
        tb = min(MAX_TB, _round_up(pl.cdiv(B, 2), 8))
    grid = (pl.cdiv(B, tb),)

    full = lambda a: pl.BlockSpec(a.shape, lambda b: (0,) * a.ndim)

    grid_spec = pltpu.PrefetchScalarGridSpec(
        num_scalar_prefetch=0,
        grid=grid,
        in_specs=[
            pl.BlockSpec((tb, FLAT_X), lambda b: (b, 0)),   # merged inputs
            pl.BlockSpec((tb, N_PART), lambda b: (b, 0)),   # mask
            full(w1_b), full(emask_b), full(w2_b), full(w3_b), full(w4_b),
            full(b12), full(b34),
        ],
        out_specs=pl.BlockSpec((tb, OUT_PAD), lambda b: (b, 0)),
    )

    out = pl.pallas_call(
        functools.partial(pmnn_kernel, blk=phi_block),
        out_shape=jax.ShapeDtypeStruct((B, OUT_PAD), jnp.bfloat16),
        grid_spec=grid_spec,
        compiler_params=pltpu.CompilerParams(
            # batch-tile axis is independent -> shards across the 2 TCs on v7x
            dimension_semantics=("parallel",),
            vmem_limit_bytes=32 * 1024 * 1024),
    )(x, m, w1_b, emask_b, w2_b, w3_b, w4_b, b12, b34)

    return out[:, :NUM_CLASSES].astype(jnp.float32)


def pmnn_wrapper_forward(points, features, lorentz_vectors, mask, params,
                         embed_parts=False):
    """Mirrors PMNNWrapper.forward: PMNN(features, v=lorentz_vectors, mask=mask)."""
    return _pmnn_forward(points, features, lorentz_vectors, mask, params,
                         embed_parts=embed_parts, phi_block=_phi_block())


# --------------------------------- main --------------------------------------
if __name__ == "__main__":
    B = 2
    key = jax.random.PRNGKey(0)
    k_feat, k_vec, k_pts, k_param = jax.random.split(key, 4)

    # PyTorch-convention inputs: NCL = (batch, channels, particles)
    points = jax.random.normal(k_pts, (B, 2, N_PART), jnp.float32)        # unused
    features = jax.random.normal(k_feat, (B, N_FEAT, N_PART), jnp.float32)
    lorentz_vectors = jax.random.normal(k_vec, (B, N_VEC, N_PART), jnp.float32)
    # deterministic mask: event 0 has all 16 particles, event 1 has first 10
    part_idx = jnp.arange(N_PART)[None, None, :]                          # (1,1,P)
    n_valid = jnp.array([[[N_PART]], [[10]]], jnp.int32)                  # (B,1,1)
    mask = (part_idx < n_valid).astype(jnp.float32)                       # (B,1,P)

    params = init_params(k_param)

    logits = pmnn_wrapper_forward(points, features, lorentz_vectors, mask,
                                  params, embed_parts=False)
    jax.block_until_ready(logits)

    assert logits.shape == (B, NUM_CLASSES)
    assert jnp.all(jnp.isfinite(logits))

    # Pure-JAX f32 reference (natural, un-dilated math).  Kernel matmuls run in
    # bf16 with f32 accumulation, so the tolerance is loosened accordingly.
    xr = jnp.transpose(
        jnp.concatenate([features, lorentz_vectors], axis=1), (0, 2, 1))  # (B,P,C_IN)
    mr = jnp.transpose(mask, (0, 2, 1))                                   # (B,P,1)
    h = jnp.maximum(xr @ params["w1"] + params["b1"], 0.0)
    h = jnp.maximum(h @ params["w2"] + params["b2"], 0.0)
    pooled = jnp.sum(h * mr, axis=1)
    g = jnp.maximum(pooled @ params["w3"] + params["b3"], 0.0)
    ref = g @ params["w4"] + params["b4"]
    assert jnp.allclose(logits, ref, atol=2e-2, rtol=2e-2), (
        jnp.max(jnp.abs(logits - ref)))

    print("KERNEL_OK")
</pallas_src>

<mosaic_0001>
module attributes {stable_mosaic.version = 11 : i64} {
  func.func @pmnn_kernel(%arg0: i32, %arg1: memref<2x128xbf16, #tpu.memory_space<vmem>>, %arg2: memref<2x16xbf16, #tpu.memory_space<vmem>>, %arg3: memref<128x512xbf16, #tpu.memory_space<vmem>>, %arg4: memref<16x512xbf16, #tpu.memory_space<vmem>>, %arg5: memref<256x256xbf16, #tpu.memory_space<vmem>>, %arg6: memref<256x128xbf16, #tpu.memory_space<vmem>>, %arg7: memref<128x128xbf16, #tpu.memory_space<vmem>>, %arg8: memref<2x512xf32, #tpu.memory_space<vmem>>, %arg9: memref<2x128xf32, #tpu.memory_space<vmem>>, %arg10: memref<2x128xbf16, #tpu.memory_space<vmem>>) attributes {dimension_semantics = [#tpu.dimension_semantics<parallel>], iteration_bounds = array<i64: 1>, scalar_prefetch = 0 : i64, scratch_operands = 0 : i64, tpu.core_type = #tpu.core_type<tc>, window_params = [{transform_indices = @transform_0, window_bounds = array<i64: 2, 128>}, {transform_indices = @transform_1, window_bounds = array<i64: 2, 16>}, {pipeline_mode = #tpu.pipeline_mode<synchronous>, transform_indices = @transform_2, window_bounds = array<i64: 128, 512>}, {pipeline_mode = #tpu.pipeline_mode<synchronous>, transform_indices = @transform_3, window_bounds = array<i64: 16, 512>}, {pipeline_mode = #tpu.pipeline_mode<synchronous>, transform_indices = @transform_4, window_bounds = array<i64: 256, 256>}, {pipeline_mode = #tpu.pipeline_mode<synchronous>, transform_indices = @transform_5, window_bounds = array<i64: 256, 128>}, {pipeline_mode = #tpu.pipeline_mode<synchronous>, transform_indices = @transform_6, window_bounds = array<i64: 128, 128>}, {pipeline_mode = #tpu.pipeline_mode<synchronous>, transform_indices = @transform_7, window_bounds = array<i64: 2, 512>}, {pipeline_mode = #tpu.pipeline_mode<synchronous>, transform_indices = @transform_8, window_bounds = array<i64: 2, 128>}, {transform_indices = @transform_9, window_bounds = array<i64: 2, 128>}]} {
    %c0 = arith.constant 0 : index
    %c0_0 = arith.constant 0 : index
    %0 = vector.load %arg1[%c0, %c0_0] : memref<2x128xbf16, #tpu.memory_space<vmem>>, vector<2x128xbf16>
    %c0_1 = arith.constant 0 : index
    %c0_2 = arith.constant 0 : index
    %1 = vector.load %arg2[%c0_1, %c0_2] : memref<2x16xbf16, #tpu.memory_space<vmem>>, vector<2x16xbf16>
    %c0_3 = arith.constant 0 : index
    %c0_4 = arith.constant 0 : index
    %2 = vector.load %arg8[%c0_3, %c0_4] : memref<2x512xf32, #tpu.memory_space<vmem>>, vector<2x512xf32>
    %c0_5 = arith.constant 0 : index
    %c0_6 = arith.constant 0 : index
    %3 = vector.load %arg9[%c0_5, %c0_6] : memref<2x128xf32, #tpu.memory_space<vmem>>, vector<2x128xf32>
    %4 = vector.extract_strided_slice %2 {offsets = [0, 0], sizes = [1, 512], strides = [1, 1]} : vector<2x512xf32> to vector<1x512xf32>
    %5 = vector.extract_strided_slice %2 {offsets = [1, 0], sizes = [1, 256], strides = [1, 1]} : vector<2x512xf32> to vector<1x256xf32>
    %6 = vector.extract_strided_slice %3 {offsets = [0, 0], sizes = [1, 128], strides = [1, 1]} : vector<2x128xf32> to vector<1x128xf32>
    %7 = vector.extract_strided_slice %3 {offsets = [1, 0], sizes = [1, 128], strides = [1, 1]} : vector<2x128xf32> to vector<1x128xf32>
    %c0_7 = arith.constant 0 : index
    %c0_8 = arith.constant 0 : index
    %8 = vector.load %arg3[%c0_7, %c0_8] : memref<128x512xbf16, #tpu.memory_space<vmem>>, vector<128x512xbf16>
    %cst = arith.constant dense<0.000000e+00> : vector<2x512xf32>
    %9 = tpu.matmul %0, %8, %cst {dimension_numbers = #tpu.dot_dimension_numbers<[1], [0], [0], [1], [0, 0, 1, 1], [], []>} : vector<2x128xbf16>, vector<128x512xbf16>, vector<2x512xf32> -> vector<2x512xf32>
    %10 = vector.broadcast %4 : vector<1x512xf32> to vector<2x512xf32>
    %11 = arith.addf %9, %10 : vector<2x512xf32>
    %cst_9 = arith.constant 0.000000e+00 : f32
    %12 = vector.broadcast %cst_9 : f32 to vector<2x512xf32>
    %13 = arith.maximumf %11, %12 : vector<2x512xf32>
    %c0_10 = arith.constant 0 : index
    %c0_11 = arith.constant 0 : index
    %14 = vector.load %arg4[%c0_10, %c0_11] : memref<16x512xbf16, #tpu.memory_space<vmem>>, vector<16x512xbf16>
    %cst_12 = arith.constant dense<0.000000e+00> : vector<2x512xf32>
    %15 = tpu.matmul %1, %14, %cst_12 {dimension_numbers = #tpu.dot_dimension_numbers<[1], [0], [0], [1], [0, 0, 1, 1], [], []>} : vector<2x16xbf16>, vector<16x512xbf16>, vector<2x512xf32> -> vector<2x512xf32>
    %c0_13 = arith.constant 0 : index
    %c0_14 = arith.constant 0 : index
    %16 = vector.load %arg5[%c0_13, %c0_14] : memref<256x256xbf16, #tpu.memory_space<vmem>>, vector<256x256xbf16>
    %c0_15 = arith.constant 0 : index
    %c0_16 = arith.constant 0 : index
    %17 = vector.load %arg6[%c0_15, %c0_16] : memref<256x128xbf16, #tpu.memory_space<vmem>>, vector<256x128xbf16>
    %cst_17 = arith.constant 0.000000e+00 : f32
    %18 = vector.broadcast %cst_17 : f32 to vector<2x128xf32>
    %19 = vector.extract_strided_slice %13 {offsets = [0, 0], sizes = [2, 256], strides = [1, 1]} : vector<2x512xf32> to vector<2x256xf32>
    %20 = arith.truncf %19 : vector<2x256xf32> to vector<2x256xbf16>
    %cst_18 = arith.constant dense<0.000000e+00> : vector<2x256xf32>
    %21 = tpu.matmul %20, %16, %cst_18 {dimension_numbers = #tpu.dot_dimension_numbers<[1], [0], [0], [1], [0, 0, 1, 1], [], []>} : vector<2x256xbf16>, vector<256x256xbf16>, vector<2x256xf32> -> vector<2x256xf32>
    %22 = vector.broadcast %5 : vector<1x256xf32> to vector<2x256xf32>
    %23 = arith.addf %21, %22 : vector<2x256xf32>
    %cst_19 = arith.constant 0.000000e+00 : f32
    %24 = vector.broadcast %cst_19 : f32 to vector<2x256xf32>
    %25 = arith.maximumf %23, %24 : vector<2x256xf32>
    %26 = vector.extract_strided_slice %15 {offsets = [0, 0], sizes = [2, 256], strides = [1, 1]} : vector<2x512xf32> to vector<2x256xf32>
    %27 = arith.mulf %25, %26 : vector<2x256xf32>
    %28 = arith.truncf %27 : vector<2x256xf32> to vector<2x256xbf16>
    %cst_20 = arith.constant dense<0.000000e+00> : vector<2x128xf32>
    %29 = tpu.matmul %28, %17, %cst_20 {dimension_numbers = #tpu.dot_dimension_numbers<[1], [0], [0], [1], [0, 0, 1, 1], [], []>} : vector<2x256xbf16>, vector<256x128xbf16>, vector<2x128xf32> -> vector<2x128xf32>
    %30 = arith.addf %18, %29 : vector<2x128xf32>
    %31 = vector.extract_strided_slice %13 {offsets = [0, 256], sizes = [2, 256], strides = [1, 1]} : vector<2x512xf32> to vector<2x256xf32>
    %32 = arith.truncf %31 : vector<2x256xf32> to vector<2x256xbf16>
    %cst_21 = arith.constant dense<0.000000e+00> : vector<2x256xf32>
    %33 = tpu.matmul %32, %16, %cst_21 {dimension_numbers = #tpu.dot_dimension_numbers<[1], [0], [0], [1], [0, 0, 1, 1], [], []>} : vector<2x256xbf16>, vector<256x256xbf16>, vector<2x256xf32> -> vector<2x256xf32>
    %34 = vector.broadcast %5 : vector<1x256xf32> to vector<2x256xf32>
    %35 = arith.addf %33, %34 : vector<2x256xf32>
    %cst_22 = arith.constant 0.000000e+00 : f32
    %36 = vector.broadcast %cst_22 : f32 to vector<2x256xf32>
    %37 = arith.maximumf %35, %36 : vector<2x256xf32>
    %38 = vector.extract_strided_slice %15 {offsets = [0, 256], sizes = [2, 256], strides = [1, 1]} : vector<2x512xf32> to vector<2x256xf32>
    %39 = arith.mulf %37, %38 : vector<2x256xf32>
    %40 = arith.truncf %39 : vector<2x256xf32> to vector<2x256xbf16>
    %cst_23 = arith.constant dense<0.000000e+00> : vector<2x128xf32>
    %41 = tpu.matmul %40, %17, %cst_23 {dimension_numbers = #tpu.dot_dimension_numbers<[1], [0], [0], [1], [0, 0, 1, 1], [], []>} : vector<2x256xbf16>, vector<256x128xbf16>, vector<2x128xf32> -> vector<2x128xf32>
    %42 = arith.addf %30, %41 : vector<2x128xf32>
    %43 = vector.broadcast %6 : vector<1x128xf32> to vector<2x128xf32>
    %44 = arith.addf %42, %43 : vector<2x128xf32>
    %cst_24 = arith.constant 0.000000e+00 : f32
    %45 = vector.broadcast %cst_24 : f32 to vector<2x128xf32>
    %46 = arith.maximumf %44, %45 : vector<2x128xf32>
    %47 = arith.truncf %46 : vector<2x128xf32> to vector<2x128xbf16>
    %c0_25 = arith.constant 0 : index
    %c0_26 = arith.constant 0 : index
    %48 = vector.load %arg7[%c0_25, %c0_26] : memref<128x128xbf16, #tpu.memory_space<vmem>>, vector<128x128xbf16>
    %cst_27 = arith.constant dense<0.000000e+00> : vector<2x128xf32>
    %49 = tpu.matmul %47, %48, %cst_27 {dimension_numbers = #tpu.dot_dimension_numbers<[1], [0], [0], [1], [0, 0, 1, 1], [], []>} : vector<2x128xbf16>, vector<128x128xbf16>, vector<2x128xf32> -> vector<2x128xf32>
    %50 = vector.broadcast %7 : vector<1x128xf32> to vector<2x128xf32>
    %51 = arith.addf %49, %50 : vector<2x128xf32>
    %52 = arith.truncf %51 : vector<2x128xf32> to vector<2x128xbf16>
    %c0_28 = arith.constant 0 : index
    %c0_29 = arith.constant 0 : index
    %53 = vector.load %arg10[%c0_28, %c0_29] : memref<2x128xbf16, #tpu.memory_space<vmem>>, vector<2x128xbf16>
    tpu.vector_store %arg10[%c0_28, %c0_29], %52 {strides = array<i32>} : memref<2x128xbf16, #tpu.memory_space<vmem>>, vector<2x128xbf16>,
    return
  }
  func.func @transform_0(%arg0: i32) -> (i32, i32) {
    %c0_i32 = arith.constant 0 : i32
    %c0_i32_0 = arith.constant 0 : i32
    return %arg0, %c0_i32 : i32, i32
  }
  func.func @transform_1(%arg0: i32) -> (i32, i32) {
    %c0_i32 = arith.constant 0 : i32
    %c0_i32_0 = arith.constant 0 : i32
    return %arg0, %c0_i32 : i32, i32
  }
  func.func @transform_2(%arg0: i32) -> (i32, i32) {
    %c0_i32 = arith.constant 0 : i32
    %c0_i32_0 = arith.constant 0 : i32
    %c0_i32_1 = arith.constant 0 : i32
    return %c0_i32, %c0_i32_0 : i32, i32
  }
  func.func @transform_3(%arg0: i32) -> (i32, i32) {
    %c0_i32 = arith.constant 0 : i32
    %c0_i32_0 = arith.constant 0 : i32
    %c0_i32_1 = arith.constant 0 : i32
    return %c0_i32, %c0_i32_0 : i32, i32
  }
  func.func @transform_4(%arg0: i32) -> (i32, i32) {
    %c0_i32 = arith.constant 0 : i32
    %c0_i32_0 = arith.constant 0 : i32
    %c0_i32_1 = arith.constant 0 : i32
    return %c0_i32, %c0_i32_0 : i32, i32
  }
  func.func @transform_5(%arg0: i32) -> (i32, i32) {
    %c0_i32 = arith.constant 0 : i32
    %c0_i32_0 = arith.constant 0 : i32
    %c0_i32_1 = arith.constant 0 : i32
    return %c0_i32, %c0_i32_0 : i32, i32
  }
  func.func @transform_6(%arg0: i32) -> (i32, i32) {
    %c0_i32 = arith.constant 0 : i32
    %c0_i32_0 = arith.constant 0 : i32
    %c0_i32_1 = arith.constant 0 : i32
    return %c0_i32, %c0_i32_0 : i32, i32
  }
  func.func @transform_7(%arg0: i32) -> (i32, i32) {
    %c0_i32 = arith.constant 0 : i32
    %c0_i32_0 = arith.constant 0 : i32
    %c0_i32_1 = arith.constant 0 : i32
    return %c0_i32, %c0_i32_0 : i32, i32
  }
  func.func @transform_8(%arg0: i32) -> (i32, i32) {
    %c0_i32 = arith.constant 0 : i32
    %c0_i32_0 = arith.constant 0 : i32
    %c0_i32_1 = arith.constant 0 : i32
    return %c0_i32, %c0_i32_0 : i32, i32
  }
  func.func @transform_9(%arg0: i32) -> (i32, i32) {
    %c0_i32 = arith.constant 0 : i32
    %c0_i32_0 = arith.constant 0 : i32
    return %arg0, %c0_i32 : i32, i32
  }
}

</mosaic_0001>

<llo_original>
// kernel: _pmnn_forward.1
$region0: #{_pmnn_forward.1}
  #allocation0 [shape = 'u32[]', space=smem, size = 0x4, offset = 0x4, fixed_abs, tag = 'smem constant byte address 0x4 - core index']
  #allocation1 [shape = 'u32[144,128]{1,0:T(1,128)}', space=vmem, size = 0x12000, scoped, tag = 'internal scratch']
  %s0 = inlined_call_operand.vmem [shape: bf16[2,128], index: 0, kind: input, shape index: {}]
  %s1 = inlined_call_operand.vmem [shape: bf16[2,16], index: 1, kind: input, shape index: {}]
  %s2 = inlined_call_operand.vmem [shape: bf16[128,512], index: 2, kind: input, shape index: {}]
  %s3 = inlined_call_operand.vmem [shape: bf16[16,512], index: 3, kind: input, shape index: {}]
  %s4 = inlined_call_operand.vmem [shape: bf16[256,256], index: 4, kind: input, shape index: {}]
  %s5 = inlined_call_operand.vmem [shape: bf16[256,128], index: 5, kind: input, shape index: {}]
  %s6 = inlined_call_operand.vmem [shape: bf16[128,128], index: 6, kind: input, shape index: {}]
  %s7 = inlined_call_operand.vmem [shape: f32[2,512], index: 7, kind: input, shape index: {}]
  %s8 = inlined_call_operand.vmem [shape: f32[2,128], index: 8, kind: input, shape index: {}]
  %s9 = inlined_call_operand.vmem [shape: bf16[2,128], index: 9, kind: output, shape index: {}]
  %s10 = sld [smem:[#allocation0]]
  $region46: #{_pmnn_forward.1} parent=0
    _
  %s12 = ssub.s32 1, %s10
  %s13 = scalar_select 0, %s12, %s10
  // Predicated region
  $region2: #{_pmnn_forward.1} parent=0 // pred_check
    _
  $region3: #{_pmnn_forward.1} parent=0 // pred_check_branch
    %15 = sbr.rel (0) target = $region5
  $region4: #{_pmnn_forward.1} parent=0 // pred_region
    _
  $region5: #{_pmnn_forward.1} parent=0 // pred_fallthru
    _
  // Predicated region
  $region6: #{_pmnn_forward.1} parent=0 // pred_check
    _
  $region7: #{_pmnn_forward.1} parent=0 // pred_check_branch
    %17 = sbr.rel (0) target = $region9
  $region8: #{_pmnn_forward.1} parent=0 // pred_region
    _
  $region9: #{_pmnn_forward.1} parent=0 // pred_fallthru
    _
  // Predicated region
  $region10: #{_pmnn_forward.1} parent=0 // pred_check
    _
  $region11: #{_pmnn_forward.1} parent=0 // pred_check_branch
    %19 = sbr.rel (0) target = $region13
  $region12: #{_pmnn_forward.1} parent=0 // pred_region
    _
  $region13: #{_pmnn_forward.1} parent=0 // pred_fallthru
    _
  // Predicated region
  $region14: #{_pmnn_forward.1} parent=0 // pred_check
    _
  $region15: #{_pmnn_forward.1} parent=0 // pred_check_branch
    %21 = sbr.rel (0) target = $region17
  $region16: #{_pmnn_forward.1} parent=0 // pred_region
    _
  $region17: #{_pmnn_forward.1} parent=0 // pred_fallthru
    _
  // Predicated region
  $region18: #{_pmnn_forward.1} parent=0 // pred_check
    _
  $region19: #{_pmnn_forward.1} parent=0 // pred_check_branch
    %23 = sbr.rel (0) target = $region21
  $region20: #{_pmnn_forward.1} parent=0 // pred_region
    _
  $region21: #{_pmnn_forward.1} parent=0 // pred_fallthru
    _
  // Predicated region
  $region22: #{_pmnn_forward.1} parent=0 // pred_check
    _
  $region23: #{_pmnn_forward.1} parent=0 // pred_check_branch
    %25 = sbr.rel (0) target = $region25
  $region24: #{_pmnn_forward.1} parent=0 // pred_region
    _
  $region25: #{_pmnn_forward.1} parent=0 // pred_fallthru
    _
  // Predicated region
  $region26: #{_pmnn_forward.1} parent=0 // pred_check
    _
  $region27: #{_pmnn_forward.1} parent=0 // pred_check_branch
    %27 = sbr.rel (0) target = $region29
  $region28: #{_pmnn_forward.1} parent=0 // pred_region
    _
  $region29: #{_pmnn_forward.1} parent=0 // pred_fallthru
    _
  // Predicated region
  $region30: #{_pmnn_forward.1} parent=0 // pred_check
    _
  $region31: #{_pmnn_forward.1} parent=0 // pred_check_branch
    %29 = sbr.rel (0) target = $region33
  $region32: #{_pmnn_forward.1} parent=0 // pred_region
    _
  $region33: #{_pmnn_forward.1} parent=0 // pred_fallthru
    _
  // Predicated region
  $region34: #{_pmnn_forward.1} parent=0 // pred_check
    _
  $region35: #{_pmnn_forward.1} parent=0 // pred_check_branch
    %31 = sbr.rel (0) target = $region37
  $region36: #{_pmnn_forward.1} parent=0 // pred_region
    _
  $region37: #{_pmnn_forward.1} parent=0 // pred_fallthru
    _
  %v33 = vld [vmem:[%s0] sm:$0x1]
  %v34 = vld [vmem:[%s1] sm:$0x1]
  %v35 = vld [vmem:[%s7] sm:$0xff]
  %v36 = vld [vmem:[%s8] sm:$0x3]
  %v37 = vld [vmem:[%s2] sm:$0xff]
  %v38 = vld [vmem:[%s2 + $0x8] sm:$0xff]
  %v39 = vld [vmem:[%s2 + $0x10] sm:$0xff]
  %v40 = vld [vmem:[%s2 + $0x18] sm:$0xff]
  %v41 = vld [vmem:[%s2 + $0x20] sm:$0xff]
  %v42 = vld [vmem:[%s2 + $0x28] sm:$0xff]
  %v43 = vld [vmem:[%s2 + $0x30] sm:$0xff]
  %v44 = vld [vmem:[%s2 + $0x38] sm:$0xff]
  %v45 = vld [vmem:[%s2 + $0x40] sm:$0xff]
  %v46 = vld [vmem:[%s2 + $0x48] sm:$0xff]
  %v47 = vld [vmem:[%s2 + $0x50] sm:$0xff]
  %v48 = vld [vmem:[%s2 + $0x58] sm:$0xff]
  %v49 = vld [vmem:[%s2 + $0x60] sm:$0xff]
  %v50 = vld [vmem:[%s2 + $0x68] sm:$0xff]
  %v51 = vld [vmem:[%s2 + $0x70] sm:$0xff]
  %v52 = vld [vmem:[%s2 + $0x78] sm:$0xff]
  %v53 = vld [vmem:[%s2 + $0x80] sm:$0xff]
  %v54 = vld [vmem:[%s2 + $0x88] sm:$0xff]
  %v55 = vld [vmem:[%s2 + $0x90] sm:$0xff]
  %v56 = vld [vmem:[%s2 + $0x98] sm:$0xff]
  %v57 = vld [vmem:[%s2 + $0xa0] sm:$0xff]
  %v58 = vld [vmem:[%s2 + $0xa8] sm:$0xff]
  %v59 = vld [vmem:[%s2 + $0xb0] sm:$0xff]
  %v60 = vld [vmem:[%s2 + $0xb8] sm:$0xff]
  %v61 = vld [vmem:[%s2 + $0xc0] sm:$0xff]
  %v62 = vld [vmem:[%s2 + $0xc8] sm:$0xff]
  %v63 = vld [vmem:[%s2 + $0xd0] sm:$0xff]
  %v64 = vld [vmem:[%s2 + $0xd8] sm:$0xff]
  %v65 = vld [vmem:[%s2 + $0xe0] sm:$0xff]
  %v66 = vld [vmem:[%s2 + $0xe8] sm:$0xff]
  %v67 = vld [vmem:[%s2 + $0xf0] sm:$0xff]
  %v68 = vld [vmem:[%s2 + $0xf8] sm:$0xff]
  %v70 = vlaneseq
  %v71 = vshrl.u32 %v70, 7
  %v72 = vsub.s32 0, %v71
  %v73 = vrot.slane %v35, %v72
  %v74 = vlaneseq
  %v75 = vshrl.u32 %v74, 7
  %v76 = vsub.s32 2, %v75
  %v77 = vrot.slane %v35, %v76
  %v78 = vlaneseq
  %v79 = vshrl.u32 %v78, 7
  %v80 = vsub.s32 4, %v79
  %v81 = vrot.slane %v35, %v80
  %v82 = vlaneseq
  %v83 = vshrl.u32 %v82, 7
  %v84 = vsub.s32 6, %v83
  %v85 = vrot.slane %v35, %v84
  %v90 = vlaneseq
  %v91 = vshrl.u32 %v90, 7
  %v92 = vsub.s32 0, %v91
  %v93 = vrot.slane %v73, %v92
  %v94 = vlaneseq
  %v95 = vshrl.u32 %v94, 7
  %v96 = vsub.s32 0, %v95
  %v97 = vrot.slane %v77, %v96
  %v98 = vlaneseq
  %v99 = vshrl.u32 %v98, 7
  %v100 = vsub.s32 0, %v99
  %v101 = vrot.slane %v81, %v100
  %v102 = vlaneseq
  %v103 = vshrl.u32 %v102, 7
  %v104 = vsub.s32 0, %v103
  %v105 = vrot.slane %v85, %v104
  %v138 = vunpack.c.l.b16 %v37
  %v139 = vunpack.c.h.b16 %v37
  %v140 = vunpack.c.l.b16 %v38
  %v141 = vunpack.c.h.b16 %v38
  %v142 = vunpack.c.l.b16 %v39
  %v143 = vunpack.c.h.b16 %v39
  %v144 = vunpack.c.l.b16 %v40
  %v145 = vunpack.c.h.b16 %v40
  %v146 = vunpack.c.l.b16 %v41
  %v147 = vunpack.c.h.b16 %v41
  %v148 = vunpack.c.l.b16 %v42
  %v149 = vunpack.c.h.b16 %v42
  %v150 = vunpack.c.l.b16 %v43
  %v151 = vunpack.c.h.b16 %v43
  %v152 = vunpack.c.l.b16 %v44
  %v153 = vunpack.c.h.b16 %v44
  %v154 = vunpack.c.l.b16 %v45
  %v155 = vunpack.c.h.b16 %v45
  %v156 = vunpack.c.l.b16 %v46
  %v157 = vunpack.c.h.b16 %v46
  %v158 = vunpack.c.l.b16 %v47
  %v159 = vunpack.c.h.b16 %v47
  %v160 = vunpack.c.l.b16 %v48
  %v161 = vunpack.c.h.b16 %v48
  %v162 = vunpack.c.l.b16 %v49
  %v163 = vunpack.c.h.b16 %v49
  %v164 = vunpack.c.l.b16 %v50
  %v165 = vunpack.c.h.b16 %v50
  %v166 = vunpack.c.l.b16 %v51
  %v167 = vunpack.c.h.b16 %v51
  %v168 = vunpack.c.l.b16 %v52
  %v169 = vunpack.c.h.b16 %v52
  %v170 = vunpack.c.l.b16 %v53
  %v171 = vunpack.c.h.b16 %v53
  %v172 = vunpack.c.l.b16 %v54
  %v173 = vunpack.c.h.b16 %v54
  %v174 = vunpack.c.l.b16 %v55
  %v175 = vunpack.c.h.b16 %v55
  %v176 = vunpack.c.l.b16 %v56
  %v177 = vunpack.c.h.b16 %v56
  %v178 = vunpack.c.l.b16 %v57
  %v179 = vunpack.c.h.b16 %v57
  %v180 = vunpack.c.l.b16 %v58
  %v181 = vunpack.c.h.b16 %v58
  %v182 = vunpack.c.l.b16 %v59
  %v183 = vunpack.c.h.b16 %v59
  %v184 = vunpack.c.l.b16 %v60
  %v185 = vunpack.c.h.b16 %v60
  %v186 = vunpack.c.l.b16 %v61
  %v187 = vunpack.c.h.b16 %v61
  %v188 = vunpack.c.l.b16 %v62
  %v189 = vunpack.c.h.b16 %v62
  %v190 = vunpack.c.l.b16 %v63
  %v191 = vunpack.c.h.b16 %v63
  %v192 = vunpack.c.l.b16 %v64
  %v193 = vunpack.c.h.b16 %v64
  %v194 = vunpack.c.l.b16 %v65
  %v195 = vunpack.c.h.b16 %v65
  %v196 = vunpack.c.l.b16 %v66
  %v197 = vunpack.c.h.b16 %v66
  %v198 = vunpack.c.l.b16 %v67
  %v199 = vunpack.c.h.b16 %v67
  %v200 = vunpack.c.l.b16 %v68
  %v201 = vunpack.c.h.b16 %v68
  %v202 = vpack.c.b16 %v142, %v138
  %v203 = vpack.c.b16 %v143, %v139
  %v204 = vpack.c.b16 %v144, %v140
  %v205 = vpack.c.b16 %v145, %v141
  %v206 = vpack.c.b16 %v150, %v146
  %v207 = vpack.c.b16 %v151, %v147
  %v208 = vpack.c.b16 %v152, %v148
  %v209 = vpack.c.b16 %v153, %v149
  %v210 = vpack.c.b16 %v158, %v154
  %v211 = vpack.c.b16 %v159, %v155
  %v212 = vpack.c.b16 %v160, %v156
  %v213 = vpack.c.b16 %v161, %v157
  %v214 = vpack.c.b16 %v166, %v162
  %v215 = vpack.c.b16 %v167, %v163
  %v216 = vpack.c.b16 %v168, %v164
  %v217 = vpack.c.b16 %v169, %v165
  %v218 = vpack.c.b16 %v174, %v170
  %v219 = vpack.c.b16 %v175, %v171
  %v220 = vpack.c.b16 %v176, %v172
  %v221 = vpack.c.b16 %v177, %v173
  %v222 = vpack.c.b16 %v182, %v178
  %v223 = vpack.c.b16 %v183, %v179
  %v224 = vpack.c.b16 %v184, %v180
  %v225 = vpack.c.b16 %v185, %v181
  %v226 = vpack.c.b16 %v190, %v186
  %v227 = vpack.c.b16 %v191, %v187
  %v228 = vpack.c.b16 %v192, %v188
  %v229 = vpack.c.b16 %v193, %v189
  %v230 = vpack.c.b16 %v198, %v194
  %v231 = vpack.c.b16 %v199, %v195
  %v232 = vpack.c.b16 %v200, %v196
  %v233 = vpack.c.b16 %v201, %v197
  %266 = vmatprep.subr.bf16.mxu0 %v203
  %267 = vmatpush1.bf16.msra.mxu0 %v202
  %268 = vmatprep.subr.bf16.mxu0 %v207
  %269 = vmatpush1.bf16.msra.mxu0 %v206
  %270 = vmatprep.subr.bf16.mxu0 %v211
  %271 = vmatpush1.bf16.msra.mxu0 %v210
  %272 = vmatprep.subr.bf16.mxu0 %v215
  %273 = vmatpush1.bf16.msra.mxu0 %v214
  %274 = vmatprep.subr.bf16.mxu0 %v219
  %275 = vmatpush1.bf16.msra.mxu0 %v218
  %276 = vmatprep.subr.bf16.mxu0 %v223
  %277 = vmatpush1.bf16.msra.mxu0 %v222
  %278 = vmatprep.subr.bf16.mxu0 %v227
  %279 = vmatpush1.bf16.msra.mxu0 %v226
  %280 = vmatprep.subr.bf16.mxu0 %v231
  %281 = vmatpush1.bf16.msra.mxu0 %v230
  %282 = vmatprep.subr.bf16.mxu0 0
  %283 = vmatpush1.bf16.msra.mxu0 0
  %284 = vmatprep.subr.bf16.mxu0 0
  %285 = vmatpush1.bf16.msra.mxu0 0
  %286 = vmatprep.subr.bf16.mxu0 0
  %287 = vmatpush1.bf16.msra.mxu0 0
  %288 = vmatprep.subr.bf16.mxu0 0
  %289 = vmatpush1.bf16.msra.mxu0 0
  %290 = vmatprep.subr.bf16.mxu0 0
  %291 = vmatpush1.bf16.msra.mxu0 0
  %292 = vmatprep.subr.bf16.mxu0 0
  %293 = vmatpush1.bf16.msra.mxu0 0
  %294 = vmatprep.subr.bf16.mxu0 0
  %295 = vmatpush1.bf16.msra.mxu0 0
  %296 = vmatprep.subr.bf16.mxu0 0
  %297 = vmatpush1.bf16.msra.mxu0 0
  %298 = vmatprep.mubr.bf16.mxu0 0
  %299 = vmatmul.mubr.bf16.gmra.mrb[0].mxu0 %v33
  %v300 = vpop.f32.mrb[0].mxu0
  %v301 = vadd.f32 %v93, %v300
  %v302 = vpop.f32.mrb[0].mxu0
  %v303 = vadd.f32 %v97, %v302
  %v304 = vpop.f32.mrb[0].mxu0
  %v305 = vpop.f32.mrb[0].mxu0
  %306 = vdwg.mxu0
  %307 = vmatprep.subr.bf16.mxu0 %v205
  %308 = vmatpush1.bf16.msra.mxu0 %v204
  %309 = vmatprep.subr.bf16.mxu0 %v209
  %310 = vmatpush1.bf16.msra.mxu0 %v208
  %311 = vmatprep.subr.bf16.mxu0 %v213
  %312 = vmatpush1.bf16.msra.mxu0 %v212
  %313 = vmatprep.subr.bf16.mxu0 %v217
  %314 = vmatpush1.bf16.msra.mxu0 %v216
  %315 = vmatprep.subr.bf16.mxu0 %v221
  %316 = vmatpush1.bf16.msra.mxu0 %v220
  %317 = vmatprep.subr.bf16.mxu0 %v225
  %318 = vmatpush1.bf16.msra.mxu0 %v224
  %319 = vmatprep.subr.bf16.mxu0 %v229
  %320 = vmatpush1.bf16.msra.mxu0 %v228
  %321 = vmatprep.subr.bf16.mxu0 %v233
  %322 = vmatpush1.bf16.msra.mxu0 %v232
  %323 = vmatprep.subr.bf16.mxu0 0
  %324 = vmatpush1.bf16.msra.mxu0 0
  %325 = vmatprep.subr.bf16.mxu0 0
  %326 = vmatpush1.bf16.msra.mxu0 0
  %327 = vmatprep.subr.bf16.mxu0 0
  %328 = vmatpush1.bf16.msra.mxu0 0
  %329 = vmatprep.subr.bf16.mxu0 0
  %330 = vmatpush1.bf16.msra.mxu0 0
  %331 = vmatprep.subr.bf16.mxu0 0
  %332 = vmatpush1.bf16.msra.mxu0 0
  %333 = vmatprep.subr.bf16.mxu0 0
  %334 = vmatpush1.bf16.msra.mxu0 0
  %335 = vmatprep.subr.bf16.mxu0 0
  %336 = vmatpush1.bf16.msra.mxu0 0
  %337 = vmatprep.subr.bf16.mxu0 0
  %338 = vmatpush1.bf16.msra.mxu0 0
  %339 = vmatprep.mubr.bf16.mxu0 0
  %340 = vmatmul.mubr.bf16.gmra.mrb[0].mxu0 %v33
  %v341 = vpop.f32.mrb[0].mxu0
  %v342 = vadd.f32 %v101, %v341
  %v343 = vpop.f32.mrb[0].mxu0
  %v344 = vadd.f32 %v105, %v343
  %v345 = vpop.f32.mrb[0].mxu0
  %v346 = vpop.f32.mrb[0].mxu0
  %347 = vdwg.mxu0
  %v348 = vmax.f32 %v301, 0.0
  %v349 = vmax.f32 %v303, 0.0
  %v350 = vmax.f32 %v342, 0.0
  %v351 = vmax.f32 %v344, 0.0
  %v352 = vld [vmem:[%s3] sm:$0xff]
  %v353 = vld [vmem:[%s3 + $0x8] sm:$0xff]
  %v354 = vld [vmem:[%s3 + $0x10] sm:$0xff]
  %v355 = vld [vmem:[%s3 + $0x18] sm:$0xff]
  %v360 = vunpack.c.l.b16 %v352
  %v361 = vunpack.c.h.b16 %v352
  %v362 = vunpack.c.l.b16 %v353
  %v363 = vunpack.c.h.b16 %v353
  %v364 = vunpack.c.l.b16 %v354
  %v365 = vunpack.c.h.b16 %v354
  %v366 = vunpack.c.l.b16 %v355
  %v367 = vunpack.c.h.b16 %v355
  %v368 = vpack.c.b16 %v364, %v360
  %v369 = vpack.c.b16 %v365, %v361
  %v370 = vpack.c.b16 %v366, %v362
  %v371 = vpack.c.b16 %v367, %v363
  %vm376 = vcmask 130048
  %v378 = vsel %vm376, %v34, 0
  %380 = vmatprep.subr.bf16.mxu0 %v369
  %381 = vmatpush1.bf16.msra.mxu0 %v368
  %382 = vmatprep.subr.bf16.mxu0 0
  %383 = vmatpush1.bf16.msra.mxu0 0
  %384 = vmatprep.subr.bf16.mxu0 0
  %385 = vmatpush1.bf16.msra.mxu0 0
  %386 = vmatprep.subr.bf16.mxu0 0
  %387 = vmatpush1.bf16.msra.mxu0 0
  %388 = vmatprep.subr.bf16.mxu0 0
  %389 = vmatpush1.bf16.msra.mxu0 0
  %390 = vmatprep.subr.bf16.mxu0 0
  %391 = vmatpush1.bf16.msra.mxu0 0
  %392 = vmatprep.subr.bf16.mxu0 0
  %393 = vmatpush1.bf16.msra.mxu0 0
  %394 = vmatprep.subr.bf16.mxu0 0
  %395 = vmatpush1.bf16.msra.mxu0 0
  %396 = vmatprep.subr.bf16.mxu0 0
  %397 = vmatpush1.bf16.msra.mxu0 0
  %398 = vmatprep.subr.bf16.mxu0 0
  %399 = vmatpush1.bf16.msra.mxu0 0
  %400 = vmatprep.subr.bf16.mxu0 0
  %401 = vmatpush1.bf16.msra.mxu0 0
  %402 = vmatprep.subr.bf16.mxu0 0
  %403 = vmatpush1.bf16.msra.mxu0 0
  %404 = vmatprep.subr.bf16.mxu0 0
  %405 = vmatpush1.bf16.msra.mxu0 0
  %406 = vmatprep.subr.bf16.mxu0 0
  %407 = vmatpush1.bf16.msra.mxu0 0
  %408 = vmatprep.subr.bf16.mxu0 0
  %409 = vmatpush1.bf16.msra.mxu0 0
  %410 = vmatprep.subr.bf16.mxu0 0
  %411 = vmatpush1.bf16.msra.mxu0 0
  %412 = vmatprep.mubr.bf16.mxu0 0
  %413 = vmatmul.mubr.bf16.gmra.mrb[0].mxu0 %v378
  %v414 = vpop.f32.mrb[0].mxu0
  %v415 = vadd.f32 0.0, %v414
  %v416 = vpop.f32.mrb[0].mxu0
  %v417 = vadd.f32 0.0, %v416
  %v418 = vpop.f32.mrb[0].mxu0
  %v419 = vpop.f32.mrb[0].mxu0
  %420 = vdwg.mxu0
  %421 = vmatprep.subr.bf16.mxu0 %v371
  %422 = vmatpush1.bf16.msra.mxu0 %v370
  %423 = vmatprep.subr.bf16.mxu0 0
  %424 = vmatpush1.bf16.msra.mxu0 0
  %425 = vmatprep.subr.bf16.mxu0 0
  %426 = vmatpush1.bf16.msra.mxu0 0
  %427 = vmatprep.subr.bf16.mxu0 0
  %428 = vmatpush1.bf16.msra.mxu0 0
  %429 = vmatprep.subr.bf16.mxu0 0
  %430 = vmatpush1.bf16.msra.mxu0 0
  %431 = vmatprep.subr.bf16.mxu0 0
  %432 = vmatpush1.bf16.msra.mxu0 0
  %433 = vmatprep.subr.bf16.mxu0 0
  %434 = vmatpush1.bf16.msra.mxu0 0
  %435 = vmatprep.subr.bf16.mxu0 0
  %436 = vmatpush1.bf16.msra.mxu0 0
  %437 = vmatprep.subr.bf16.mxu0 0
  %438 = vmatpush1.bf16.msra.mxu0 0
  %439 = vmatprep.subr.bf16.mxu0 0
  %440 = vmatpush1.bf16.msra.mxu0 0
  %441 = vmatprep.subr.bf16.mxu0 0
  %442 = vmatpush1.bf16.msra.mxu0 0
  %443 = vmatprep.subr.bf16.mxu0 0
  %444 = vmatpush1.bf16.msra.mxu0 0
  %445 = vmatprep.subr.bf16.mxu0 0
  %446 = vmatpush1.bf16.msra.mxu0 0
  %447 = vmatprep.subr.bf16.mxu0 0
  %448 = vmatpush1.bf16.msra.mxu0 0
  %449 = vmatprep.subr.bf16.mxu0 0
  %450 = vmatpush1.bf16.msra.mxu0 0
  %451 = vmatprep.subr.bf16.mxu0 0
  %452 = vmatpush1.bf16.msra.mxu0 0
  %453 = vmatprep.mubr.bf16.mxu0 0
  %454 = vmatmul.mubr.bf16.gmra.mrb[0].mxu0 %v378
  %v455 = vpop.f32.mrb[0].mxu0
  %v456 = vadd.f32 0.0, %v455
  %v457 = vpop.f32.mrb[0].mxu0
  %v458 = vadd.f32 0.0, %v457
  %v459 = vpop.f32.mrb[0].mxu0
  %v460 = vpop.f32.mrb[0].mxu0
  %461 = vdwg.mxu0
  %v462 = vld [vmem:[%s4] sm:$0xff]
  %v463 = vld [vmem:[%s4 + $0x8] sm:$0xff]
  %v464 = vld [vmem:[%s4 + $0x10] sm:$0xff]
  %v465 = vld [vmem:[%s4 + $0x18] sm:$0xff]
  %v466 = vld [vmem:[%s4 + $0x20] sm:$0xff]
  %v467 = vld [vmem:[%s4 + $0x28] sm:$0xff]
  %v468 = vld [vmem:[%s4 + $0x30] sm:$0xff]
  %v469 = vld [vmem:[%s4 + $0x38] sm:$0xff]
  %v470 = vld [vmem:[%s4 + $0x40] sm:$0xff]
  %v471 = vld [vmem:[%s4 + $0x48] sm:$0xff]
  %v472 = vld [vmem:[%s4 + $0x50] sm:$0xff]
  %v473 = vld [vmem:[%s4 + $0x58] sm:$0xff]
  %v474 = vld [vmem:[%s4 + $0x60] sm:$0xff]
  %v475 = vld [vmem:[%s4 + $0x68] sm:$0xff]
  %v476 = vld [vmem:[%s4 + $0x70] sm:$0xff]
  %v477 = vld [vmem:[%s4 + $0x78] sm:$0xff]
  %v478 = vld [vmem:[%s4 + $0x80] sm:$0xff]
  %v479 = vld [vmem:[%s4 + $0x88] sm:$0xff]
  %v480 = vld [vmem:[%s4 + $0x90] sm:$0xff]
  %v481 = vld [vmem:[%s4 + $0x98] sm:$0xff]
  %v482 = vld [vmem:[%s4 + $0xa0] sm:$0xff]
  %v483 = vld [vmem:[%s4 + $0xa8] sm:$0xff]
  %v484 = vld [vmem:[%s4 + $0xb0] sm:$0xff]
  %v485 = vld [vmem:[%s4 + $0xb8] sm:$0xff]
  %v486 = vld [vmem:[%s4 + $0xc0] sm:$0xff]
  %v487 = vld [vmem:[%s4 + $0xc8] sm:$0xff]
  %v488 = vld [vmem:[%s4 + $0xd0] sm:$0xff]
  %v489 = vld [vmem:[%s4 + $0xd8] sm:$0xff]
  %v490 = vld [vmem:[%s4 + $0xe0] sm:$0xff]
  %v491 = vld [vmem:[%s4 + $0xe8] sm:$0xff]
  %v492 = vld [vmem:[%s4 + $0xf0] sm:$0xff]
  %v493 = vld [vmem:[%s4 + $0xf8] sm:$0xff]
  %v494 = vld [vmem:[%s5] sm:$0xf]
  %v495 = vld [vmem:[%s5 + $0x4] sm:$0xf]
  %v496 = vld [vmem:[%s5 + $0x8] sm:$0xf]
  %v497 = vld [vmem:[%s5 + $0xc] sm:$0xf]
  %v498 = vld [vmem:[%s5 + $0x10] sm:$0xf]
  %v499 = vld [vmem:[%s5 + $0x14] sm:$0xf]
  %v500 = vld [vmem:[%s5 + $0x18] sm:$0xf]
  %v501 = vld [vmem:[%s5 + $0x1c] sm:$0xf]
  %v502 = vld [vmem:[%s5 + $0x20] sm:$0xf]
  %v503 = vld [vmem:[%s5 + $0x24] sm:$0xf]
  %v504 = vld [vmem:[%s5 + $0x28] sm:$0xf]
  %v505 = vld [vmem:[%s5 + $0x2c] sm:$0xf]
  %v506 = vld [vmem:[%s5 + $0x30] sm:$0xf]
  %v507 = vld [vmem:[%s5 + $0x34] sm:$0xf]
  %v508 = vld [vmem:[%s5 + $0x38] sm:$0xf]
  %v509 = vld [vmem:[%s5 + $0x3c] sm:$0xf]
  %v510 = vld [vmem:[%s5 + $0x40] sm:$0xf]
  %v511 = vld [vmem:[%s5 + $0x44] sm:$0xf]
  %v512 = vld [vmem:[%s5 + $0x48] sm:$0xf]
  %v513 = vld [vmem:[%s5 + $0x4c] sm:$0xf]
  %v514 = vld [vmem:[%s5 + $0x50] sm:$0xf]
  %v515 = vld [vmem:[%s5 + $0x54] sm:$0xf]
  %v516 = vld [vmem:[%s5 + $0x58] sm:$0xf]
  %v517 = vld [vmem:[%s5 + $0x5c] sm:$0xf]
  %v518 = vld [vmem:[%s5 + $0x60] sm:$0xf]
  %v519 = vld [vmem:[%s5 + $0x64] sm:$0xf]
  %v520 = vld [vmem:[%s5 + $0x68] sm:$0xf]
  %v521 = vld [vmem:[%s5 + $0x6c] sm:$0xf]
  %v522 = vld [vmem:[%s5 + $0x70] sm:$0xf]
  %v523 = vld [vmem:[%s5 + $0x74] sm:$0xf]
  %v524 = vld [vmem:[%s5 + $0x78] sm:$0xf]
  %v525 = vld [vmem:[%s5 + $0x7c] sm:$0xf]
  %v526 = vpack.c.bf16 %v348, %v348
  %v527 = vpack.c.bf16 %v349, %v349
  %v528 = vlaneseq
  %v529 = vshrl.u32 %v528, 7
  %v530 = vsub.s32 1, %v529
  %v531 = vrot.slane %v35, %v530
  %v532 = vlaneseq
  %v533 = vshrl.u32 %v532, 7
  %v534 = vsub.s32 3, %v533
  %v535 = vrot.slane %v35, %v534
  %v538 = vlaneseq
  %v539 = vshrl.u32 %v538, 7
  %v540 = vsub.s32 1, %v539
  %v541 = vrot.slane %v531, %v540
  %v542 = vlaneseq
  %v543 = vshrl.u32 %v542, 7
  %v544 = vsub.s32 1, %v543
  %v545 = vrot.slane %v535, %v544
  %v578 = vunpack.c.l.b16 %v462
  %v579 = vunpack.c.h.b16 %v462
  %v580 = vunpack.c.l.b16 %v463
  %v581 = vunpack.c.h.b16 %v463
  %v582 = vunpack.c.l.b16 %v464
  %v583 = vunpack.c.h.b16 %v464
  %v584 = vunpack.c.l.b16 %v465
  %v585 = vunpack.c.h.b16 %v465
  %v586 = vunpack.c.l.b16 %v466
  %v587 = vunpack.c.h.b16 %v466
  %v588 = vunpack.c.l.b16 %v467
  %v589 = vunpack.c.h.b16 %v467
  %v590 = vunpack.c.l.b16 %v468
  %v591 = vunpack.c.h.b16 %v468
  %v592 = vunpack.c.l.b16 %v469
  %v593 = vunpack.c.h.b16 %v469
  %v594 = vunpack.c.l.b16 %v470
  %v595 = vunpack.c.h.b16 %v470
  %v596 = vunpack.c.l.b16 %v471
  %v597 = vunpack.c.h.b16 %v471
  %v598 = vunpack.c.l.b16 %v472
  %v599 = vunpack.c.h.b16 %v472
  %v600 = vunpack.c.l.b16 %v473
  %v601 = vunpack.c.h.b16 %v473
  %v602 = vunpack.c.l.b16 %v474
  %v603 = vunpack.c.h.b16 %v474
  %v604 = vunpack.c.l.b16 %v475
  %v605 = vunpack.c.h.b16 %v475
  %v606 = vunpack.c.l.b16 %v476
  %v607 = vunpack.c.h.b16 %v476
  %v608 = vunpack.c.l.b16 %v477
  %v609 = vunpack.c.h.b16 %v477
  %v610 = vunpack.c.l.b16 %v478
  %v611 = vunpack.c.h.b16 %v478
  %v612 = vunpack.c.l.b16 %v479
  %v613 = vunpack.c.h.b16 %v479
  %v614 = vunpack.c.l.b16 %v480
  %v615 = vunpack.c.h.b16 %v480
  %v616 = vunpack.c.l.b16 %v481
  %v617 = vunpack.c.h.b16 %v481
  %v618 = vunpack.c.l.b16 %v482
  %v619 = vunpack.c.h.b16 %v482
  %v620 = vunpack.c.l.b16 %v483
  %v621 = vunpack.c.h.b16 %v483
  %v622 = vunpack.c.l.b16 %v484
  %v623 = vunpack.c.h.b16 %v484
  %v624 = vunpack.c.l.b16 %v485
  %v625 = vunpack.c.h.b16 %v485
  %v626 = vunpack.c.l.b16 %v486
  %v627 = vunpack.c.h.b16 %v486
  %v628 = vunpack.c.l.b16 %v487
  %v629 = vunpack.c.h.b16 %v487
  %v630 = vunpack.c.l.b16 %v488
  %v631 = vunpack.c.h.b16 %v488
  %v632 = vunpack.c.l.b16 %v489
  %v633 = vunpack.c.h.b16 %v489
  %v634 = vunpack.c.l.b16 %v490
  %v635 = vunpack.c.h.b16 %v490
  %v636 = vunpack.c.l.b16 %v491
  %v637 = vunpack.c.h.b16 %v491
  %v638 = vunpack.c.l.b16 %v492
  %v639 = vunpack.c.h.b16 %v492
  %v640 = vunpack.c.l.b16 %v493
  %v641 = vunpack.c.h.b16 %v493
  %v642 = vpack.c.b16 %v580, %v578
  %v643 = vpack.c.b16 %v581, %v579
  %v644 = vpack.c.b16 %v584, %v582
  %v645 = vpack.c.b16 %v585, %v583
  %v646 = vpack.c.b16 %v588, %v586
  %v647 = vpack.c.b16 %v589, %v587
  %v648 = vpack.c.b16 %v592, %v590
  %v649 = vpack.c.b16 %v593, %v591
  %v650 = vpack.c.b16 %v596, %v594
  %v651 = vpack.c.b16 %v597, %v595
  %v652 = vpack.c.b16 %v600, %v598
  %v653 = vpack.c.b16 %v601, %v599
  %v654 = vpack.c.b16 %v604, %v602
  %v655 = vpack.c.b16 %v605, %v603
  %v656 = vpack.c.b16 %v608, %v606
  %v657 = vpack.c.b16 %v609, %v607
  %v658 = vpack.c.b16 %v612, %v610
  %v659 = vpack.c.b16 %v613, %v611
  %v660 = vpack.c.b16 %v616, %v614
  %v661 = vpack.c.b16 %v617, %v615
  %v662 = vpack.c.b16 %v620, %v618
  %v663 = vpack.c.b16 %v621, %v619
  %v664 = vpack.c.b16 %v624, %v622
  %v665 = vpack.c.b16 %v625, %v623
  %v666 = vpack.c.b16 %v628, %v626
  %v667 = vpack.c.b16 %v629, %v627
  %v668 = vpack.c.b16 %v632, %v630
  %v669 = vpack.c.b16 %v633, %v631
  %v670 = vpack.c.b16 %v636, %v634
  %v671 = vpack.c.b16 %v637, %v635
  %v672 = vpack.c.b16 %v640, %v638
  %v673 = vpack.c.b16 %v641, %v639
  %706 = vmatprep.subr.bf16.mxu0 %v643
  %707 = vmatpush1.bf16.msra.mxu0 %v642
  %708 = vmatprep.subr.bf16.mxu0 %v645
  %709 = vmatpush1.bf16.msra.mxu0 %v644
  %710 = vmatprep.subr.bf16.mxu0 %v647
  %711 = vmatpush1.bf16.msra.mxu0 %v646
  %712 = vmatprep.subr.bf16.mxu0 %v649
  %713 = vmatpush1.bf16.msra.mxu0 %v648
  %714 = vmatprep.subr.bf16.mxu0 %v651
  %715 = vmatpush1.bf16.msra.mxu0 %v650
  %716 = vmatprep.subr.bf16.mxu0 %v653
  %717 = vmatpush1.bf16.msra.mxu0 %v652
  %718 = vmatprep.subr.bf16.mxu0 %v655
  %719 = vmatpush1.bf16.msra.mxu0 %v654
  %720 = vmatprep.subr.bf16.mxu0 %v657
  %721 = vmatpush1.bf16.msra.mxu0 %v656
  %722 = vmatprep.subr.bf16.mxu0 %v659
  %723 = vmatpush1.bf16.msra.mxu0 %v658
  %724 = vmatprep.subr.bf16.mxu0 %v661
  %725 = vmatpush1.bf16.msra.mxu0 %v660
  %726 = vmatprep.subr.bf16.mxu0 %v663
  %727 = vmatpush1.bf16.msra.mxu0 %v662
  %728 = vmatprep.subr.bf16.mxu0 %v665
  %729 = vmatpush1.bf16.msra.mxu0 %v664
  %730 = vmatprep.subr.bf16.mxu0 %v667
  %731 = vmatpush1.bf16.msra.mxu0 %v666
  %732 = vmatprep.subr.bf16.mxu0 %v669
  %733 = vmatpush1.bf16.msra.mxu0 %v668
  %734 = vmatprep.subr.bf16.mxu0 %v671
  %735 = vmatpush1.bf16.msra.mxu0 %v670
  %736 = vmatprep.subr.bf16.mxu0 %v673
  %737 = vmatpush1.bf16.msra.mxu0 %v672
  %738 = vmatprep.mubr.bf16.mxu0 %v527
  %739 = vmatmul.mubr.bf16.gmra.mrb[0].mxu0 %v526
  %v740 = vpop.f32.mrb[0].mxu0
  %v741 = vadd.f32 %v541, %v740
  %v742 = vpop.f32.mrb[0].mxu0
  %v743 = vadd.f32 %v545, %v742
  %v744 = vpop.f32.mrb[0].mxu0
  %v745 = vpop.f32.mrb[0].mxu0
  %746 = vdwg.mxu0
  %v747 = vmax.f32 %v741, 0.0
  %v748 = vmax.f32 %v743, 0.0
  %v749 = vmul.f32 %v747, %v415
  %v750 = vmul.f32 %v748, %v417
  %v751 = vpack.c.bf16 %v749, %v749
  %v752 = vpack.c.bf16 %v750, %v750
  %v753 = vpack.c.bf16 %v350, %v350
  %v754 = vpack.c.bf16 %v351, %v351
  %755 = vmatprep.subr.bf16.mxu0 %v643
  %756 = vmatpush1.bf16.msra.mxu0 %v642
  %757 = vmatprep.subr.bf16.mxu0 %v645
  %758 = vmatpush1.bf16.msra.mxu0 %v644
  %759 = vmatprep.subr.bf16.mxu0 %v647
  %760 = vmatpush1.bf16.msra.mxu0 %v646
  %761 = vmatprep.subr.bf16.mxu0 %v649
  %762 = vmatpush1.bf16.msra.mxu0 %v648
  %763 = vmatprep.subr.bf16.mxu0 %v651
  %764 = vmatpush1.bf16.msra.mxu0 %v650
  %765 = vmatprep.subr.bf16.mxu0 %v653
  %766 = vmatpush1.bf16.msra.mxu0 %v652
  %767 = vmatprep.subr.bf16.mxu0 %v655
  %768 = vmatpush1.bf16.msra.mxu0 %v654
  %769 = vmatprep.subr.bf16.mxu0 %v657
  %770 = vmatpush1.bf16.msra.mxu0 %v656
  %771 = vmatprep.subr.bf16.mxu0 %v659
  %772 = vmatpush1.bf16.msra.mxu0 %v658
  %773 = vmatprep.subr.bf16.mxu0 %v661
  %774 = vmatpush1.bf16.msra.mxu0 %v660
  %775 = vmatprep.subr.bf16.mxu0 %v663
  %776 = vmatpush1.bf16.msra.mxu0 %v662
  %777 = vmatprep.subr.bf16.mxu0 %v665
  %778 = vmatpush1.bf16.msra.mxu0 %v664
  %779 = vmatprep.subr.bf16.mxu0 %v667
  %780 = vmatpush1.bf16.msra.mxu0 %v666
  %781 = vmatprep.subr.bf16.mxu0 %v669
  %782 = vmatpush1.bf16.msra.mxu0 %v668
  %783 = vmatprep.subr.bf16.mxu0 %v671
  %784 = vmatpush1.bf16.msra.mxu0 %v670
  %785 = vmatprep.subr.bf16.mxu0 %v673
  %786 = vmatpush1.bf16.msra.mxu0 %v672
  %787 = vmatprep.mubr.bf16.mxu0 %v754
  %788 = vmatmul.mubr.bf16.gmra.mrb[0].mxu0 %v753
  %v789 = vpop.f32.mrb[0].mxu0
  %v790 = vadd.f32 %v541, %v789
  %v791 = vpop.f32.mrb[0].mxu0
  %v792 = vadd.f32 %v545, %v791
  %v793 = vpop.f32.mrb[0].mxu0
  %v794 = vpop.f32.mrb[0].mxu0
  %795 = vdwg.mxu0
  %v796 = vmax.f32 %v790, 0.0
  %v797 = vmax.f32 %v792, 0.0
  %v798 = vmul.f32 %v796, %v456
  %v799 = vmul.f32 %v797, %v458
  %v800 = vpack.c.bf16 %v798, %v798
  %v801 = vpack.c.bf16 %v799, %v799
  %v834 = vunpack.c.l.b16 %v494
  %v835 = vunpack.c.l.b16 %v495
  %v836 = vunpack.c.l.b16 %v496
  %v837 = vunpack.c.l.b16 %v497
  %v838 = vunpack.c.l.b16 %v498
  %v839 = vunpack.c.l.b16 %v499
  %v840 = vunpack.c.l.b16 %v500
  %v841 = vunpack.c.l.b16 %v501
  %v842 = vunpack.c.l.b16 %v502
  %v843 = vunpack.c.l.b16 %v503
  %v844 = vunpack.c.l.b16 %v504
  %v845 = vunpack.c.l.b16 %v505
  %v846 = vunpack.c.l.b16 %v506
  %v847 = vunpack.c.l.b16 %v507
  %v848 = vunpack.c.l.b16 %v508
  %v849 = vunpack.c.l.b16 %v509
  %v850 = vunpack.c.l.b16 %v510
  %v851 = vunpack.c.l.b16 %v511
  %v852 = vunpack.c.l.b16 %v512
  %v853 = vunpack.c.l.b16 %v513
  %v854 = vunpack.c.l.b16 %v514
  %v855 = vunpack.c.l.b16 %v515
  %v856 = vunpack.c.l.b16 %v516
  %v857 = vunpack.c.l.b16 %v517
  %v858 = vunpack.c.l.b16 %v518
  %v859 = vunpack.c.l.b16 %v519
  %v860 = vunpack.c.l.b16 %v520
  %v861 = vunpack.c.l.b16 %v521
  %v862 = vunpack.c.l.b16 %v522
  %v863 = vunpack.c.l.b16 %v523
  %v864 = vunpack.c.l.b16 %v524
  %v865 = vunpack.c.l.b16 %v525
  %v866 = vpack.c.b16 %v835, %v834
  %v867 = vpack.c.b16 %v837, %v836
  %v868 = vpack.c.b16 %v839, %v838
  %v869 = vpack.c.b16 %v841, %v840
  %v870 = vpack.c.b16 %v843, %v842
  %v871 = vpack.c.b16 %v845, %v844
  %v872 = vpack.c.b16 %v847, %v846
  %v873 = vpack.c.b16 %v849, %v848
  %v874 = vpack.c.b16 %v851, %v850
  %v875 = vpack.c.b16 %v853, %v852
  %v876 = vpack.c.b16 %v855, %v854
  %v877 = vpack.c.b16 %v857, %v856
  %v878 = vpack.c.b16 %v859, %v858
  %v879 = vpack.c.b16 %v861, %v860
  %v880 = vpack.c.b16 %v863, %v862
  %v881 = vpack.c.b16 %v865, %v864
  %898 = vmatprep.subr.bf16.mxu0 0
  %899 = vmatpush1.bf16.msra.mxu0 %v866
  %900 = vmatprep.subr.bf16.mxu0 0
  %901 = vmatpush1.bf16.msra.mxu0 %v867
  %902 = vmatprep.subr.bf16.mxu0 0
  %903 = vmatpush1.bf16.msra.mxu0 %v868
  %904 = vmatprep.subr.bf16.mxu0 0
  %905 = vmatpush1.bf16.msra.mxu0 %v869
  %906 = vmatprep.subr.bf16.mxu0 0
  %907 = vmatpush1.bf16.msra.mxu0 %v870
  %908 = vmatprep.subr.bf16.mxu0 0
  %909 = vmatpush1.bf16.msra.mxu0 %v871
  %910 = vmatprep.subr.bf16.mxu0 0
  %911 = vmatpush1.bf16.msra.mxu0 %v872
  %912 = vmatprep.subr.bf16.mxu0 0
  %913 = vmatpush1.bf16.msra.mxu0 %v873
  %914 = vmatprep.subr.bf16.mxu0 0
  %915 = vmatpush1.bf16.msra.mxu0 %v874
  %916 = vmatprep.subr.bf16.mxu0 0
  %917 = vmatpush1.bf16.msra.mxu0 %v875
  %918 = vmatprep.subr.bf16.mxu0 0
  %919 = vmatpush1.bf16.msra.mxu0 %v876
  %920 = vmatprep.subr.bf16.mxu0 0
  %921 = vmatpush1.bf16.msra.mxu0 %v877
  %922 = vmatprep.subr.bf16.mxu0 0
  %923 = vmatpush1.bf16.msra.mxu0 %v878
  %924 = vmatprep.subr.bf16.mxu0 0
  %925 = vmatpush1.bf16.msra.mxu0 %v879
  %926 = vmatprep.subr.bf16.mxu0 0
  %927 = vmatpush1.bf16.msra.mxu0 %v880
  %928 = vmatprep.subr.bf16.mxu0 0
  %929 = vmatpush1.bf16.msra.mxu0 %v881
  %930 = vmatprep.mubr.bf16.mxu0 %v801
  %931 = vmatmul.mubr.bf16.gmra.mrb[0].mxu0 %v800
  %v932 = vpop.f32.mrb[0].mxu0
  %v933 = vadd.f32 0.0, %v932
  %v934 = vpop.f32.mrb[0].mxu0
  %v935 = vpop.f32.mrb[0].mxu0
  %v936 = vpop.f32.mrb[0].mxu0
  %937 = vdwg.mxu0
  %938 = vmatprep.subr.bf16.mxu0 0
  %939 = vmatpush1.bf16.msra.mxu0 %v866
  %940 = vmatprep.subr.bf16.mxu0 0
  %941 = vmatpush1.bf16.msra.mxu0 %v867
  %942 = vmatprep.subr.bf16.mxu0 0
  %943 = vmatpush1.bf16.msra.mxu0 %v868
  %944 = vmatprep.subr.bf16.mxu0 0
  %945 = vmatpush1.bf16.msra.mxu0 %v869
  %946 = vmatprep.subr.bf16.mxu0 0
  %947 = vmatpush1.bf16.msra.mxu0 %v870
  %948 = vmatprep.subr.bf16.mxu0 0
  %949 = vmatpush1.bf16.msra.mxu0 %v871
  %950 = vmatprep.subr.bf16.mxu0 0
  %951 = vmatpush1.bf16.msra.mxu0 %v872
  %952 = vmatprep.subr.bf16.mxu0 0
  %953 = vmatpush1.bf16.msra.mxu0 %v873
  %954 = vmatprep.subr.bf16.mxu0 0
  %955 = vmatpush1.bf16.msra.mxu0 %v874
  %956 = vmatprep.subr.bf16.mxu0 0
  %957 = vmatpush1.bf16.msra.mxu0 %v875
  %958 = vmatprep.subr.bf16.mxu0 0
  %959 = vmatpush1.bf16.msra.mxu0 %v876
  %960 = vmatprep.subr.bf16.mxu0 0
  %961 = vmatpush1.bf16.msra.mxu0 %v877
  %962 = vmatprep.subr.bf16.mxu0 0
  %963 = vmatpush1.bf16.msra.mxu0 %v878
  %964 = vmatprep.subr.bf16.mxu0 0
  %965 = vmatpush1.bf16.msra.mxu0 %v879
  %966 = vmatprep.subr.bf16.mxu0 0
  %967 = vmatpush1.bf16.msra.mxu0 %v880
  %968 = vmatprep.subr.bf16.mxu0 0
  %969 = vmatpush1.bf16.msra.mxu0 %v881
  %970 = vmatprep.mubr.bf16.mxu0 %v752
  %971 = vmatmul.mubr.bf16.gmra.mrb[0].mxu0 %v751
  %v972 = vpop.f32.mrb[0].mxu0
  %v973 = vadd.f32 %v933, %v972
  %v974 = vpop.f32.mrb[0].mxu0
  %v975 = vpop.f32.mrb[0].mxu0
  %v976 = vpop.f32.mrb[0].mxu0
  %977 = vdwg.mxu0
  %v978 = vlaneseq
  %v979 = vshrl.u32 %v978, 7
  %v980 = vsub.s32 0, %v979
  %v981 = vrot.slane %v36, %v980
  %v982 = vadd.f32 %v973, %v981
  %v983 = vmax.f32 %v982, 0.0
  %v984 = vpack.c.bf16 %v983, %v983
  %v985 = vld [vmem:[%s6] sm:$0xf]
  %v986 = vld [vmem:[%s6 + $0x4] sm:$0xf]
  %v987 = vld [vmem:[%s6 + $0x8] sm:$0xf]
  %v988 = vld [vmem:[%s6 + $0xc] sm:$0xf]
  %v989 = vld [vmem:[%s6 + $0x10] sm:$0xf]
  %v990 = vld [vmem:[%s6 + $0x14] sm:$0xf]
  %v991 = vld [vmem:[%s6 + $0x18] sm:$0xf]
  %v992 = vld [vmem:[%s6 + $0x1c] sm:$0xf]
  %v993 = vld [vmem:[%s6 + $0x20] sm:$0xf]
  %v994 = vld [vmem:[%s6 + $0x24] sm:$0xf]
  %v995 = vld [vmem:[%s6 + $0x28] sm:$0xf]
  %v996 = vld [vmem:[%s6 + $0x2c] sm:$0xf]
  %v997 = vld [vmem:[%s6 + $0x30] sm:$0xf]
  %v998 = vld [vmem:[%s6 + $0x34] sm:$0xf]
  %v999 = vld [vmem:[%s6 + $0x38] sm:$0xf]
  %v1000 = vld [vmem:[%s6 + $0x3c] sm:$0xf]
  %v1001 = vlaneseq
  %v1002 = vshrl.u32 %v1001, 7
  %v1003 = vsub.s32 1, %v1002
  %v1004 = vrot.slane %v36, %v1003
  %v1021 = vunpack.c.l.b16 %v985
  %v1022 = vunpack.c.l.b16 %v986
  %v1023 = vunpack.c.l.b16 %v987
  %v1024 = vunpack.c.l.b16 %v988
  %v1025 = vunpack.c.l.b16 %v989
  %v1026 = vunpack.c.l.b16 %v990
  %v1027 = vunpack.c.l.b16 %v991
  %v1028 = vunpack.c.l.b16 %v992
  %v1029 = vunpack.c.l.b16 %v993
  %v1030 = vunpack.c.l.b16 %v994
  %v1031 = vunpack.c.l.b16 %v995
  %v1032 = vunpack.c.l.b16 %v996
  %v1033 = vunpack.c.l.b16 %v997
  %v1034 = vunpack.c.l.b16 %v998
  %v1035 = vunpack.c.l.b16 %v999
  %v1036 = vunpack.c.l.b16 %v1000
  %v1037 = vpack.c.b16 %v1022, %v1021
  %v1038 = vpack.c.b16 %v1024, %v1023
  %v1039 = vpack.c.b16 %v1026, %v1025
  %v1040 = vpack.c.b16 %v1028, %v1027
  %v1041 = vpack.c.b16 %v1030, %v1029
  %v1042 = vpack.c.b16 %v1032, %v1031
  %v1043 = vpack.c.b16 %v1034, %v1033
  %v1044 = vpack.c.b16 %v1036, %v1035
  %1053 = vmatprep.subr.bf16.mxu0 0
  %1054 = vmatpush1.bf16.msra.mxu0 %v1037
  %1055 = vmatprep.subr.bf16.mxu0 0
  %1056 = vmatpush1.bf16.msra.mxu0 %v1038
  %1057 = vmatprep.subr.bf16.mxu0 0
  %1058 = vmatpush1.bf16.msra.mxu0 %v1039
  %1059 = vmatprep.subr.bf16.mxu0 0
  %1060 = vmatpush1.bf16.msra.mxu0 %v1040
  %1061 = vmatprep.subr.bf16.mxu0 0
  %1062 = vmatpush1.bf16.msra.mxu0 %v1041
  %1063 = vmatprep.subr.bf16.mxu0 0
  %1064 = vmatpush1.bf16.msra.mxu0 %v1042
  %1065 = vmatprep.subr.bf16.mxu0 0
  %1066 = vmatpush1.bf16.msra.mxu0 %v1043
  %1067 = vmatprep.subr.bf16.mxu0 0
  %1068 = vmatpush1.bf16.msra.mxu0 %v1044
  %1069 = vmatprep.subr.bf16.mxu0 0
  %1070 = vmatpush1.bf16.msra.mxu0 0
  %1071 = vmatprep.subr.bf16.mxu0 0
  %1072 = vmatpush1.bf16.msra.mxu0 0
  %1073 = vmatprep.subr.bf16.mxu0 0
  %1074 = vmatpush1.bf16.msra.mxu0 0
  %1075 = vmatprep.subr.bf16.mxu0 0
  %1076 = vmatpush1.bf16.msra.mxu0 0
  %1077 = vmatprep.subr.bf16.mxu0 0
  %1078 = vmatpush1.bf16.msra.mxu0 0
  %1079 = vmatprep.subr.bf16.mxu0 0
  %1080 = vmatpush1.bf16.msra.mxu0 0
  %1081 = vmatprep.subr.bf16.mxu0 0
  %1082 = vmatpush1.bf16.msra.mxu0 0
  %1083 = vmatprep.subr.bf16.mxu0 0
  %1084 = vmatpush1.bf16.msra.mxu0 0
  %1085 = vmatprep.mubr.bf16.mxu0 0
  %1086 = vmatmul.mubr.bf16.gmra.mrb[0].mxu0 %v984
  %v1087 = vpop.f32.mrb[0].mxu0
  %v1088 = vadd.f32 %v1004, %v1087
  %v1089 = vpop.f32.mrb[0].mxu0
  %v1090 = vpop.f32.mrb[0].mxu0
  %v1091 = vpop.f32.mrb[0].mxu0
  %1092 = vdwg.mxu0
  %v1093 = vpack.c.bf16 %v1088, %v1088
  %1094 = vst [vmem:[%s9] sm:$0x1] %v1093
  // Predicated region
  $region38: #{_pmnn_forward.1} parent=0 // pred_check
    _
  $region39: #{_pmnn_forward.1} parent=0 // pred_check_branch
    %1096 = sbr.rel (0) target = $region41
  $region40: #{_pmnn_forward.1} parent=0 // pred_region
    _
  $region41: #{_pmnn_forward.1} parent=0 // pred_fallthru
    _
  // Predicated region
  $region42: #{_pmnn_forward.1} parent=0 // pred_check
    _
  $region43: #{_pmnn_forward.1} parent=0 // pred_check_branch
    %1098 = sbr.rel (0) target = $region45
  $region44: #{_pmnn_forward.1} parent=0 // pred_region
    _
  $region45: #{_pmnn_forward.1} parent=0 // pred_fallthru
    _

</llo_original>
